<compile_context>
chip_gen: v7x
topology: tpu7x:2x2x1
jax: 0.10.0
libtpu: 0.0.40
codegen_flags: <defaults>
</compile_context>

<pallas_src>
import functools

import jax
import jax.numpy as jnp
from jax.experimental import pallas as pl
from jax.experimental.pallas import tpu as pltpu


# ---------------------------------------------------------------------------
# Kernels
# ---------------------------------------------------------------------------
def sae_kernel_fused(emb_ref, w_enc_ref, b_enc_ref, w_dec_ref, b_dec_ref,
                     enc_ref, recon_ref):
    """f32-output path: accumulate the decoder reduction directly into the
    resident recon output block (no scratch, no finalize copy).

    emb_ref   : [TB, D]   input rows (compute dtype)
    w_enc_ref : [D, TH]   encoder weight column tile ([in, out] layout)
    b_enc_ref : [1, TH]   encoder bias tile (f32)
    w_dec_ref : [TH, D]   decoder weight row tile   ([in, out] layout)
    b_dec_ref : [1, D]    decoder bias (f32, resident)
    enc_ref   : [TB, TH]  pre-ReLU encoder output tile
    recon_ref : [TB, D]   f32 reconstruction tile (resident across the H axis)
    """
    h = pl.program_id(1)

    # Encoder tile: [TB, D] @ [D, TH] + b_enc (f32 accumulation on the MXU).
    enc = jnp.dot(emb_ref[...], w_enc_ref[...],
                  preferred_element_type=jnp.float32)
    enc = enc + b_enc_ref[...]
    enc_ref[...] = enc.astype(enc_ref.dtype)

    hidden = jnp.maximum(enc, 0.0).astype(w_dec_ref.dtype)

    @pl.when(h == 0)
    def _init():
        recon_ref[...] = jnp.broadcast_to(
            b_dec_ref[...], recon_ref.shape).astype(recon_ref.dtype)

    recon_ref[...] += jnp.dot(hidden, w_dec_ref[...],
                              preferred_element_type=jnp.float32)


def sae_kernel_acc(emb_ref, w_enc_ref, b_enc_ref, w_dec_ref, b_dec_ref,
                   enc_ref, recon_ref, acc_ref):
    """Non-f32-output path: keep an f32 scratch accumulator for the decoder
    reduction and cast on finalize."""
    h = pl.program_id(1)

    @pl.when(h == 0)
    def _init():
        acc_ref[...] = jnp.zeros_like(acc_ref)

    enc = jnp.dot(emb_ref[...], w_enc_ref[...],
                  preferred_element_type=jnp.float32)
    enc = enc + b_enc_ref[...]
    enc_ref[...] = enc.astype(enc_ref.dtype)

    hidden = jnp.maximum(enc, 0.0).astype(w_dec_ref.dtype)
    acc_ref[...] += jnp.dot(hidden, w_dec_ref[...],
                            preferred_element_type=jnp.float32)

    @pl.when(h == pl.num_programs(1) - 1)
    def _finalize():
        recon_ref[...] = (acc_ref[...] + b_dec_ref[...]).astype(recon_ref.dtype)


# ---------------------------------------------------------------------------
# Tiling helpers
# ---------------------------------------------------------------------------
def _round_up(x, m):
    return ((x + m - 1) // m) * m


def _vmem_budget():
    """Per-generation VMEM budget: target ~72% of physical for the working
    set and ~85% for the scoped vmem limit (128 MiB on v5e/v6e, 64 MiB on
    v7x).  Falls back to a v7x-safe 64 MiB assumption if the query fails."""
    try:
        cap = int(pltpu.get_tpu_info().vmem_capacity_bytes)
        if cap <= 0:
            cap = 64 * 1024 * 1024
    except Exception:
        cap = 64 * 1024 * 1024
    budget = int(0.72 * cap)
    limit = int(0.85 * cap)
    return budget, limit, cap


def _choose_tiles(batch, d_pad, h_pad, cdt_size, out_size, budget,
                  use_scratch):
    """Pick (TB, TH).  Arithmetic intensity scales with TB (weights are
    re-streamed per batch tile), so keep TB as large as the budget allows;
    TH shrinks toward 256 first (MXU-aligned on v6e/v7x), TB second, TH to
    128 only as a last resort."""
    # Legal TH candidates: multiples of 128 that divide h_pad, <= 512.
    th_cands = [t for t in range(min(h_pad, 512), 127, -128) if h_pad % t == 0]
    if not th_cands:
        th_cands = [h_pad]

    def est(tb, th):
        ins = 2 * (tb * d_pad * cdt_size          # emb tile
                   + d_pad * th * cdt_size        # w_enc tile
                   + th * 4                       # b_enc tile (f32)
                   + th * d_pad * cdt_size        # w_dec tile
                   + d_pad * 4)                   # b_dec (f32)
        outs = 2 * (tb * th * out_size + tb * d_pad * out_size)
        acc = tb * d_pad * 4 if use_scratch else 0
        return ins + outs + acc

    def shrink_th(cur, floor):
        smaller = [t for t in th_cands if floor <= t < cur]
        return smaller[0] if smaller else cur

    tb = min(2048, _round_up(batch, 8))
    th = th_cands[0]

    # 1) TH down toward 256 first (keep the batch tile big).
    while est(tb, th) > budget:
        new_th = shrink_th(th, 256)
        if new_th == th:
            break
        th = new_th
    # 2) then TB.
    while est(tb, th) > budget and tb > 8:
        tb = max(8, (tb // 2) // 8 * 8)
    # 3) last resort: TH below 256, then TB again.
    while est(tb, th) > budget:
        new_th = shrink_th(th, 128)
        if new_th == th:
            break
        th = new_th
    while est(tb, th) > budget and tb > 8:
        tb = max(8, (tb // 2) // 8 * 8)

    return tb, th, est(tb, th)


# ---------------------------------------------------------------------------
# Parameter preparation (done ONCE, outside the hot path)
# ---------------------------------------------------------------------------
def init_params(key, inp_dim, hidden_dim, dtype=jnp.float32):
    """nn.Linear-style init (U[-1/sqrt(fan_in), +1/sqrt(fan_in)]), returned
    in kernel layout: w_enc [D, H], w_dec [H, D] (i.e. pre-transposed)."""
    k1, k2, k3, k4 = jax.random.split(key, 4)
    lim_enc = 1.0 / jnp.sqrt(inp_dim)
    lim_dec = 1.0 / jnp.sqrt(hidden_dim)
    w_enc = jax.random.uniform(k1, (inp_dim, hidden_dim), dtype, -lim_enc, lim_enc)
    b_enc = jax.random.uniform(k2, (hidden_dim,), dtype, -lim_enc, lim_enc)
    w_dec = jax.random.uniform(k3, (hidden_dim, inp_dim), dtype, -lim_dec, lim_dec)
    b_dec = jax.random.uniform(k4, (inp_dim,), dtype, -lim_dec, lim_dec)
    return w_enc, b_enc, w_dec, b_dec


def prepare_params(w_enc, b_enc, w_dec, b_dec, *, compute_dtype=None):
    """Hoisted out of the hot path: pad weights/biases to lane granularity
    and cast weights to the streaming dtype once.  Biases stay f32 so bf16
    streaming does not quantize them."""
    D, H = w_enc.shape
    d_pad = _round_up(D, 128)
    h_pad = _round_up(H, 128)
    cdt = compute_dtype if compute_dtype is not None else w_enc.dtype
    w_enc_p = jnp.pad(w_enc.astype(cdt), ((0, d_pad - D), (0, h_pad - H)))
    w_dec_p = jnp.pad(w_dec.astype(cdt), ((0, h_pad - H), (0, d_pad - D)))
    b_enc_p = jnp.pad(b_enc.astype(jnp.float32), (0, h_pad - H)).reshape(1, h_pad)
    b_dec_p = jnp.pad(b_dec.astype(jnp.float32), (0, d_pad - D)).reshape(1, d_pad)
    return w_enc_p, b_enc_p, w_dec_p, b_dec_p


# ---------------------------------------------------------------------------
# Forward wrapper
# ---------------------------------------------------------------------------
@functools.partial(jax.jit, static_argnames=("hidden_dim",))
def sae_forward(emb, w_enc_p, b_enc_p, w_dec_p, b_dec_p, *, hidden_dim):
    """SAE forward pass.

    emb     : [B, D]       activations
    w_enc_p : [Dp, Hp]     pre-padded/pre-cast encoder weight ([in, out])
    b_enc_p : [1, Hp]      f32 encoder bias (padded)
    w_dec_p : [Hp, Dp]     pre-padded/pre-cast decoder weight ([in, out])
    b_dec_p : [1, Dp]      f32 decoder bias (padded)
    hidden_dim : original (unpadded) hidden size, for slicing `enc`.

    Returns (enc [B, H] pre-ReLU, recon [B, D]) in emb.dtype, matching the
    PyTorch module.
    """
    B, D = emb.shape
    H = hidden_dim
    d_pad, h_pad = w_enc_p.shape
    out_dtype = emb.dtype
    cdt = w_enc_p.dtype
    cdt_size = jnp.dtype(cdt).itemsize
    out_size = jnp.dtype(out_dtype).itemsize

    emb_c = emb.astype(cdt) if emb.dtype != cdt else emb

    fuse_into_out = (out_dtype == jnp.float32)

    budget, vmem_limit, vmem_cap = _vmem_budget()
    TB, TH, vmem_est = _choose_tiles(B, d_pad, h_pad, cdt_size, out_size,
                                     budget, use_scratch=not fuse_into_out)

    # v7x (2 TensorCores, ~64 MiB VMEM): make sure the "parallel" batch axis
    # has >= 2 grid steps so megacore sharding can kick in.
    if (vmem_cap <= 80 * 1024 * 1024
            and _round_up(B, TB) // TB < 2 and TB >= 16):
        TB = max(8, (TB // 2) // 8 * 8)

    b_pad = _round_up(B, TB)
    emb_p = jnp.pad(emb_c, ((0, b_pad - B), (0, d_pad - D)))

    grid = (b_pad // TB, h_pad // TH)

    scratch_shapes = ([] if fuse_into_out
                      else [pltpu.VMEM((TB, d_pad), jnp.float32)])
    kernel = sae_kernel_fused if fuse_into_out else sae_kernel_acc

    grid_spec = pltpu.PrefetchScalarGridSpec(
        num_scalar_prefetch=0,
        grid=grid,
        in_specs=[
            pl.BlockSpec((TB, d_pad), lambda b, h: (b, 0)),   # emb rows
            pl.BlockSpec((d_pad, TH), lambda b, h: (0, h)),   # enc weight cols
            pl.BlockSpec((1, TH),     lambda b, h: (0, h)),   # enc bias tile
            pl.BlockSpec((TH, d_pad), lambda b, h: (h, 0)),   # dec weight rows
            pl.BlockSpec((1, d_pad),  lambda b, h: (0, 0)),   # dec bias (resident)
        ],
        out_specs=(
            pl.BlockSpec((TB, TH),    lambda b, h: (b, h)),   # enc tile
            pl.BlockSpec((TB, d_pad), lambda b, h: (b, 0)),   # recon (resident over h)
        ),
        scratch_shapes=scratch_shapes,
    )

    # Weights are re-streamed once per batch tile; emb/outputs move once.
    grid_b = b_pad // TB
    weight_bytes = (2 * d_pad * h_pad) * cdt_size + (h_pad + d_pad) * 4
    bytes_accessed = int(grid_b * weight_bytes
                         + b_pad * d_pad * cdt_size
                         + (b_pad * h_pad + b_pad * d_pad) * out_size)
    cost = pl.CostEstimate(flops=4 * b_pad * d_pad * h_pad,
                           transcendentals=0,
                           bytes_accessed=bytes_accessed)

    enc_p, recon_p = pl.pallas_call(
        kernel,
        out_shape=(
            jax.ShapeDtypeStruct((b_pad, h_pad), out_dtype),
            jax.ShapeDtypeStruct((b_pad, d_pad), out_dtype),
        ),
        grid_spec=grid_spec,
        compiler_params=pltpu.CompilerParams(
            dimension_semantics=("parallel", "arbitrary"),
            vmem_limit_bytes=int(vmem_limit),
        ),
        cost_estimate=cost,
    )(emb_p, w_enc_p, b_enc_p, w_dec_p, b_dec_p)

    return enc_p[:B, :H], recon_p[:B, :D]


# ---------------------------------------------------------------------------
# Demo / correctness check
# ---------------------------------------------------------------------------
if __name__ == "__main__":
    B, INP_DIM, HIDDEN_DIM = 8, 64, 32

    key = jax.random.PRNGKey(0)
    k_x, k_p = jax.random.split(key)
    emb = jax.random.normal(k_x, (B, INP_DIM), jnp.float32)
    w_enc, b_enc, w_dec, b_dec = init_params(k_p, INP_DIM, HIDDEN_DIM)

    # Reference (same math as the PyTorch module; weights stored [in, out]
    # so emb @ w_enc == emb @ W_torch.T).
    enc_ref = emb @ w_enc + b_enc
    recon_ref = jnp.maximum(enc_ref, 0.0) @ w_dec + b_dec

    # f32 path — tight numerical check.
    params_f32 = prepare_params(w_enc, b_enc, w_dec, b_dec)
    enc, recon = jax.block_until_ready(
        sae_forward(emb, *params_f32, hidden_dim=HIDDEN_DIM))
    assert enc.shape == (B, HIDDEN_DIM) and recon.shape == (B, INP_DIM)
    assert jnp.allclose(enc, enc_ref, atol=1e-5, rtol=1e-5)
    assert jnp.allclose(recon, recon_ref, atol=1e-5, rtol=1e-5)

    # bf16 weight-streaming path (halved HBM bytes, f32 accumulation,
    # f32 biases) — loose tolerance check.
    params_bf16 = prepare_params(w_enc, b_enc, w_dec, b_dec,
                                 compute_dtype=jnp.bfloat16)
    enc_b, recon_b = jax.block_until_ready(
        sae_forward(emb, *params_bf16, hidden_dim=HIDDEN_DIM))
    assert enc_b.shape == (B, HIDDEN_DIM) and recon_b.shape == (B, INP_DIM)
    assert jnp.allclose(enc_b, enc_ref, atol=5e-2, rtol=5e-2)
    assert jnp.allclose(recon_b, recon_ref, atol=5e-2, rtol=5e-2)

    print("KERNEL_OK")
</pallas_src>

<mosaic_0001>
module attributes {stable_mosaic.version = 11 : i64} {
  func.func @sae_kernel_fused(%arg0: i32, %arg1: i32, %arg2: memref<8x128xf32, #tpu.memory_space<vmem>>, %arg3: memref<128x128xf32, #tpu.memory_space<vmem>>, %arg4: memref<1x128xf32, #tpu.memory_space<vmem>>, %arg5: memref<128x128xf32, #tpu.memory_space<vmem>>, %arg6: memref<1x128xf32, #tpu.memory_space<vmem>>, %arg7: memref<8x128xf32, #tpu.memory_space<vmem>>, %arg8: memref<8x128xf32, #tpu.memory_space<vmem>>) attributes {dimension_semantics = [#tpu.dimension_semantics<parallel>, #tpu.dimension_semantics<arbitrary>], iteration_bounds = array<i64: 1, 1>, scalar_prefetch = 0 : i64, scratch_operands = 0 : i64, tpu.core_type = #tpu.core_type<tc>, window_params = [{transform_indices = @transform_0, window_bounds = array<i64: 8, 128>}, {transform_indices = @transform_1, window_bounds = array<i64: 128, 128>}, {transform_indices = @transform_2, window_bounds = array<i64: 1, 128>}, {transform_indices = @transform_3, window_bounds = array<i64: 128, 128>}, {pipeline_mode = #tpu.pipeline_mode<synchronous>, transform_indices = @transform_4, window_bounds = array<i64: 1, 128>}, {transform_indices = @transform_5, window_bounds = array<i64: 8, 128>}, {transform_indices = @transform_6, window_bounds = array<i64: 8, 128>}]} {
    %c0 = arith.constant 0 : index
    %c0_0 = arith.constant 0 : index
    %0 = vector.load %arg2[%c0, %c0_0] : memref<8x128xf32, #tpu.memory_space<vmem>>, vector<8x128xf32>
    %c0_1 = arith.constant 0 : index
    %c0_2 = arith.constant 0 : index
    %1 = vector.load %arg3[%c0_1, %c0_2] : memref<128x128xf32, #tpu.memory_space<vmem>>, vector<128x128xf32>
    %cst = arith.constant dense<0.000000e+00> : vector<8x128xf32>
    %2 = tpu.matmul %0, %1, %cst {dimension_numbers = #tpu.dot_dimension_numbers<[1], [0], [0], [1], [0, 0, 1, 1], [], []>} : vector<8x128xf32>, vector<128x128xf32>, vector<8x128xf32> -> vector<8x128xf32>
    %c0_3 = arith.constant 0 : index
    %c0_4 = arith.constant 0 : index
    %3 = vector.load %arg4[%c0_3, %c0_4] : memref<1x128xf32, #tpu.memory_space<vmem>>, vector<1x128xf32>
    %4 = vector.broadcast %3 : vector<1x128xf32> to vector<8x128xf32>
    %5 = arith.addf %2, %4 : vector<8x128xf32>
    %c0_5 = arith.constant 0 : index
    %c0_6 = arith.constant 0 : index
    %6 = vector.load %arg7[%c0_5, %c0_6] : memref<8x128xf32, #tpu.memory_space<vmem>>, vector<8x128xf32>
    tpu.vector_store %arg7[%c0_5, %c0_6], %5 {strides = array<i32>} : memref<8x128xf32, #tpu.memory_space<vmem>>, vector<8x128xf32>,
    %cst_7 = arith.constant 0.000000e+00 : f32
    %7 = vector.broadcast %cst_7 : f32 to vector<8x128xf32>
    %8 = arith.maximumf %5, %7 : vector<8x128xf32>
    %c0_i32 = arith.constant 0 : i32
    %9 = arith.cmpi eq, %arg1, %c0_i32 : i32
    %10 = arith.extui %9 : i1 to i32
    %c0_i32_8 = arith.constant 0 : i32
    %11 = arith.cmpi ne, %10, %c0_i32_8 : i32
    scf.if %11 {
      %c0_16 = arith.constant 0 : index
      %c0_17 = arith.constant 0 : index
      %17 = vector.load %arg6[%c0_16, %c0_17] : memref<1x128xf32, #tpu.memory_space<vmem>>, vector<1x128xf32>
      %18 = vector.shape_cast %17 : vector<1x128xf32> to vector<1x128xf32>
      %19 = vector.broadcast %18 : vector<1x128xf32> to vector<8x128xf32>
      %c0_18 = arith.constant 0 : index
      %c0_19 = arith.constant 0 : index
      %20 = vector.load %arg8[%c0_18, %c0_19] : memref<8x128xf32, #tpu.memory_space<vmem>>, vector<8x128xf32>
      tpu.vector_store %arg8[%c0_18, %c0_19], %19 {strides = array<i32>} : memref<8x128xf32, #tpu.memory_space<vmem>>, vector<8x128xf32>,
    } else {
    }
    %c0_9 = arith.constant 0 : index
    %c0_10 = arith.constant 0 : index
    %12 = vector.load %arg8[%c0_9, %c0_10] : memref<8x128xf32, #tpu.memory_space<vmem>>, vector<8x128xf32>
    %c0_11 = arith.constant 0 : index
    %c0_12 = arith.constant 0 : index
    %13 = vector.load %arg5[%c0_11, %c0_12] : memref<128x128xf32, #tpu.memory_space<vmem>>, vector<128x128xf32>
    %cst_13 = arith.constant dense<0.000000e+00> : vector<8x128xf32>
    %14 = tpu.matmul %8, %13, %cst_13 {dimension_numbers = #tpu.dot_dimension_numbers<[1], [0], [0], [1], [0, 0, 1, 1], [], []>} : vector<8x128xf32>, vector<128x128xf32>, vector<8x128xf32> -> vector<8x128xf32>
    %15 = arith.addf %12, %14 : vector<8x128xf32>
    %c0_14 = arith.constant 0 : index
    %c0_15 = arith.constant 0 : index
    %16 = vector.load %arg8[%c0_14, %c0_15] : memref<8x128xf32, #tpu.memory_space<vmem>>, vector<8x128xf32>
    tpu.vector_store %arg8[%c0_14, %c0_15], %15 {strides = array<i32>} : memref<8x128xf32, #tpu.memory_space<vmem>>, vector<8x128xf32>,
    return
  }
  func.func @transform_0(%arg0: i32, %arg1: i32) -> (i32, i32) {
    %c0_i32 = arith.constant 0 : i32
    %c0_i32_0 = arith.constant 0 : i32
    return %arg0, %c0_i32 : i32, i32
  }
  func.func @transform_1(%arg0: i32, %arg1: i32) -> (i32, i32) {
    %c0_i32 = arith.constant 0 : i32
    %c0_i32_0 = arith.constant 0 : i32
    return %c0_i32, %arg1 : i32, i32
  }
  func.func @transform_2(%arg0: i32, %arg1: i32) -> (i32, i32) {
    %c0_i32 = arith.constant 0 : i32
    %c0_i32_0 = arith.constant 0 : i32
    return %c0_i32, %arg1 : i32, i32
  }
  func.func @transform_3(%arg0: i32, %arg1: i32) -> (i32, i32) {
    %c0_i32 = arith.constant 0 : i32
    %c0_i32_0 = arith.constant 0 : i32
    return %arg1, %c0_i32 : i32, i32
  }
  func.func @transform_4(%arg0: i32, %arg1: i32) -> (i32, i32) {
    %c0_i32 = arith.constant 0 : i32
    %c0_i32_0 = arith.constant 0 : i32
    %c0_i32_1 = arith.constant 0 : i32
    return %c0_i32, %c0_i32_0 : i32, i32
  }
  func.func @transform_5(%arg0: i32, %arg1: i32) -> (i32, i32) {
    %c0_i32 = arith.constant 0 : i32
    return %arg0, %arg1 : i32, i32
  }
  func.func @transform_6(%arg0: i32, %arg1: i32) -> (i32, i32) {
    %c0_i32 = arith.constant 0 : i32
    %c0_i32_0 = arith.constant 0 : i32
    return %arg0, %c0_i32 : i32, i32
  }
}

</mosaic_0001>

<llo_original>
// kernel: sae_forward.1
$region0: #{sae_forward.1}
  #allocation0 [shape = 'u32[]', space=smem, size = 0x4, offset = 0x4, fixed_abs, tag = 'smem constant byte address 0x4 - core index']
  #allocation1 [shape = 'u32[144,128]{1,0:T(1,128)}', space=vmem, size = 0x12000, scoped, tag = 'internal scratch']
  %s0 = inlined_call_operand.vmem [shape: f32[8,128], index: 0, kind: input, shape index: {}]
  %s1 = inlined_call_operand.hbm [shape: f32[128,128], index: 1, kind: input, shape index: {}]
  %s2 = inlined_call_operand.vmem [shape: f32[1,128], index: 2, kind: input, shape index: {}]
  %s3 = inlined_call_operand.hbm [shape: f32[128,128], index: 3, kind: input, shape index: {}]
  %s4 = inlined_call_operand.vmem [shape: f32[1,128], index: 4, kind: input, shape index: {}]
  %s5 = inlined_call_operand.hbm [shape: f32[8,128], index: 5, kind: output, shape index: {0}]
  %s6 = inlined_call_operand.hbm [shape: f32[8,128], index: 6, kind: output, shape index: {1}]
  %7 = xla_tuple %s5, %s6
  %s8 = sld [smem:[#allocation0]]
  $region50: #{sae_forward.1} parent=0
    _
  %s10 = ssub.s32 1, %s8
  %s11 = scalar_select 0, %s10, %s8
  $region1: #{sae_forward.1} parent=0
    #allocation2 [shape = 'u8[65536]{0}', space=vmem, size = 0x10000, scoped, tag = 'input window, operand 1, single buffered']
    #allocation3 [shape = 's32[1]{0}', space=sflag, size = 0x4, scoped, tag = 'scoped memory for sae_forward.1']
    #allocation4 [shape = 's32[1]{0}', space=sflag, size = 0x4, scoped, tag = 'scoped memory for sae_forward.1']
    #allocation5 [shape = 'u8[65536]{0}', space=vmem, size = 0x10000, scoped, tag = 'input window, operand 3, single buffered']
    #allocation6 [shape = 's32[1]{0}', space=sflag, size = 0x4, scoped, tag = 'scoped memory for sae_forward.1']
    #allocation7 [shape = 'u8[4096]{0}', space=vmem, size = 0x1000, scoped, tag = 'output window, operand 0, single buffered']
    #allocation8 [shape = 'u8[4096]{0}', space=vmem, size = 0x1000, scoped, tag = 'output window, operand 1, single buffered']
    #allocation9 [shape = 's32[1]{0}', space=sflag, size = 0x4, scoped, tag = 'scoped memory for sae_forward.1']
    %12 = vsyncpa [#allocation3], 0
    %13 = vsyncpa [#allocation6], 0
    %14 = vsyncpa [#allocation4], 0
    %15 = vsyncpa [#allocation9], 0
    // Predicated region
    $region2: #{sae_forward.1} parent=1 // pred_check
      _
    $region3: #{sae_forward.1} parent=1 // pred_check_branch
      %17 = sbr.rel (0) target = $region5
    $region4: #{sae_forward.1} parent=1 // pred_region
      _
    $region5: #{sae_forward.1} parent=1 // pred_fallthru
      _
    // Predicated region
    $region6: #{sae_forward.1} parent=1 // pred_check
      _
    $region7: #{sae_forward.1} parent=1 // pred_check_branch
      %19 = sbr.rel (0) target = $region9
    $region8: #{sae_forward.1} parent=1 // pred_region
      %s21 = ssub.s32 2048, 2048
      %22 = vsyncadd [#allocation3], %s21
      %s23 = sshll.u32 [#allocation2], 4
      %s24 = int_to_ptr.vmem [resolvable:$true] %s23
      %29 = dma.hbm_to_vmem [thread:$0]  %s1, 2048, %s24, [#allocation3], 128, 128, 8
    $region9: #{sae_forward.1} parent=1 // pred_fallthru
      _
    // Predicated region
    $region10: #{sae_forward.1} parent=1 // pred_check
      _
    $region11: #{sae_forward.1} parent=1 // pred_check_branch
      %31 = sbr.rel (0) target = $region13
    $region12: #{sae_forward.1} parent=1 // pred_region
      _
    $region13: #{sae_forward.1} parent=1 // pred_fallthru
      _
    // Predicated region
    $region14: #{sae_forward.1} parent=1 // pred_check
      _
    $region15: #{sae_forward.1} parent=1 // pred_check_branch
      %33 = sbr.rel (0) target = $region17
    $region16: #{sae_forward.1} parent=1 // pred_region
      %s35 = ssub.s32 2048, 2048
      %36 = vsyncadd [#allocation6], %s35
      %s37 = sshll.u32 [#allocation5], 4
      %s38 = int_to_ptr.vmem [resolvable:$true] %s37
      %43 = dma.hbm_to_vmem [thread:$0]  %s3, 2048, %s38, [#allocation6], 128, 128, 8
    $region17: #{sae_forward.1} parent=1 // pred_fallthru
      _
    // Predicated region
    $region18: #{sae_forward.1} parent=1 // pred_check
      _
    $region19: #{sae_forward.1} parent=1 // pred_check_branch
      %45 = sbr.rel (0) target = $region21
    $region20: #{sae_forward.1} parent=1 // pred_region
      _
    $region21: #{sae_forward.1} parent=1 // pred_fallthru
      _
    // Predicated region
    $region22: #{sae_forward.1} parent=1 // pred_check
      _
    $region23: #{sae_forward.1} parent=1 // pred_check_branch
      %47 = sbr.rel (0) target = $region25
    $region24: #{sae_forward.1} parent=1 // pred_region
      %48 = dma.done [#allocation3], 2048
    $region25: #{sae_forward.1} parent=1 // pred_fallthru
      _
    // Predicated region
    $region26: #{sae_forward.1} parent=1 // pred_check
      _
    $region27: #{sae_forward.1} parent=1 // pred_check_branch
      %50 = sbr.rel (0) target = $region29
    $region28: #{sae_forward.1} parent=1 // pred_region
      %51 = dma.done [#allocation6], 2048
    $region29: #{sae_forward.1} parent=1 // pred_fallthru
      _
    %v52 = vld [vmem:[%s0] sm:$0xff]
    %v53 = vld [vmem:[#allocation2] sm:$0xff]
    %v54 = vld [vmem:[#allocation2 + $0x8] sm:$0xff]
    %v55 = vld [vmem:[#allocation2 + $0x10] sm:$0xff]
    %v56 = vld [vmem:[#allocation2 + $0x18] sm:$0xff]
    %v57 = vld [vmem:[#allocation2 + $0x20] sm:$0xff]
    %v58 = vld [vmem:[#allocation2 + $0x28] sm:$0xff]
    %v59 = vld [vmem:[#allocation2 + $0x30] sm:$0xff]
    %v60 = vld [vmem:[#allocation2 + $0x38] sm:$0xff]
    %v61 = vld [vmem:[#allocation2 + $0x40] sm:$0xff]
    %v62 = vld [vmem:[#allocation2 + $0x48] sm:$0xff]
    %v63 = vld [vmem:[#allocation2 + $0x50] sm:$0xff]
    %v64 = vld [vmem:[#allocation2 + $0x58] sm:$0xff]
    %v65 = vld [vmem:[#allocation2 + $0x60] sm:$0xff]
    %v66 = vld [vmem:[#allocation2 + $0x68] sm:$0xff]
    %v67 = vld [vmem:[#allocation2 + $0x70] sm:$0xff]
    %v68 = vld [vmem:[#allocation2 + $0x78] sm:$0xff]
    %v69 = vld [vmem:[%s2] sm:$0x1]
    %v71 = vlaneseq
    %v72 = vshrl.u32 %v71, 7
    %v73 = vsub.s32 0, %v72
    %v74 = vrot.slane %v69, %v73
    %76 = vmatprep.subr.mxu0 0.0
    %77 = vmatpush1.msra.mxu0 %v53
    %78 = vmatprep.subr.mxu0 0.0
    %79 = vmatpush1.msra.mxu0 %v54
    %80 = vmatprep.subr.mxu0 0.0
    %81 = vmatpush1.msra.mxu0 %v55
    %82 = vmatprep.subr.mxu0 0.0
    %83 = vmatpush1.msra.mxu0 %v56
    %84 = vmatprep.subr.mxu0 0.0
    %85 = vmatpush1.msra.mxu0 %v57
    %86 = vmatprep.subr.mxu0 0.0
    %87 = vmatpush1.msra.mxu0 %v58
    %88 = vmatprep.subr.mxu0 0.0
    %89 = vmatpush1.msra.mxu0 %v59
    %90 = vmatprep.subr.mxu0 0.0
    %91 = vmatpush1.msra.mxu0 %v60
    %92 = vmatprep.subr.mxu0 0.0
    %93 = vmatpush1.msra.mxu0 %v61
    %94 = vmatprep.subr.mxu0 0.0
    %95 = vmatpush1.msra.mxu0 %v62
    %96 = vmatprep.subr.mxu0 0.0
    %97 = vmatpush1.msra.mxu0 %v63
    %98 = vmatprep.subr.mxu0 0.0
    %99 = vmatpush1.msra.mxu0 %v64
    %100 = vmatprep.subr.mxu0 0.0
    %101 = vmatpush1.msra.mxu0 %v65
    %102 = vmatprep.subr.mxu0 0.0
    %103 = vmatpush1.msra.mxu0 %v66
    %104 = vmatprep.subr.mxu0 0.0
    %105 = vmatpush1.msra.mxu0 %v67
    %106 = vmatprep.subr.mxu0 0.0
    %107 = vmatpush1.msra.mxu0 %v68
    %108 = vmatprep.subr.mxu0 0.0
    %109 = vmatpush1.msra.mxu0 0.0
    %110 = vmatprep.subr.mxu0 0.0
    %111 = vmatpush1.msra.mxu0 0.0
    %112 = vmatprep.subr.mxu0 0.0
    %113 = vmatpush1.msra.mxu0 0.0
    %114 = vmatprep.subr.mxu0 0.0
    %115 = vmatpush1.msra.mxu0 0.0
    %116 = vmatprep.subr.mxu0 0.0
    %117 = vmatpush1.msra.mxu0 0.0
    %118 = vmatprep.subr.mxu0 0.0
    %119 = vmatpush1.msra.mxu0 0.0
    %120 = vmatprep.subr.mxu0 0.0
    %121 = vmatpush1.msra.mxu0 0.0
    %122 = vmatprep.subr.mxu0 0.0
    %123 = vmatpush1.msra.mxu0 0.0
    %124 = vmatprep.subr.mxu0 0.0
    %125 = vmatpush1.msra.mxu0 0.0
    %126 = vmatprep.subr.mxu0 0.0
    %127 = vmatpush1.msra.mxu0 0.0
    %128 = vmatprep.subr.mxu0 0.0
    %129 = vmatpush1.msra.mxu0 0.0
    %130 = vmatprep.subr.mxu0 0.0
    %131 = vmatpush1.msra.mxu0 0.0
    %132 = vmatprep.subr.mxu0 0.0
    %133 = vmatpush1.msra.mxu0 0.0
    %134 = vmatprep.subr.mxu0 0.0
    %135 = vmatpush1.msra.mxu0 0.0
    %136 = vmatprep.subr.mxu0 0.0
    %137 = vmatpush1.msra.mxu0 0.0
    %138 = vmatprep.subr.mxu0 0.0
    %139 = vmatpush1.msra.mxu0 0.0
    %140 = vmatprep.mubr.f32.mxu0 0.0
    %141 = vmatmul.mubr.f32.gmra.mrb[0].mxu0 %v52
    %v142 = vpop.f32.mrb[0].mxu0
    %v143 = vadd.f32 %v74, %v142
    %v144 = vpop.f32.mrb[0].mxu0
    %145 = vdwg.mxu0
    %146 = vst [vmem:[#allocation7] sm:$0xff] %v143
    %v147 = vmax.f32 %v143, 0.0
    %p148 = scmp.eq.s32.totalorder 0, 0
    // Predicated region
    $region30: #{sae_forward.1} parent=1 // pred_check
      %p149 = pneg %p148
    $region31: #{sae_forward.1} parent=1 // pred_check_branch
      %151 = sbr.rel (%p149) target = $region33
    $region32: #{sae_forward.1} parent=1 // pred_region
      %v152 = vld [vmem:[%s4] sm:$0x1]
      %v154 = vlaneseq
      %v155 = vshrl.u32 %v154, 7
      %v156 = vsub.s32 0, %v155
      %v157 = vrot.slane %v152, %v156
      %159 = vst [vmem:[#allocation8] sm:$0xff] %v157
    $region33: #{sae_forward.1} parent=1 // pred_fallthru
      _
    %v160 = vld [vmem:[#allocation8] sm:$0xff]
    %v161 = vld [vmem:[#allocation5] sm:$0xff]
    %v162 = vld [vmem:[#allocation5 + $0x8] sm:$0xff]
    %v163 = vld [vmem:[#allocation5 + $0x10] sm:$0xff]
    %v164 = vld [vmem:[#allocation5 + $0x18] sm:$0xff]
    %v165 = vld [vmem:[#allocation5 + $0x20] sm:$0xff]
    %v166 = vld [vmem:[#allocation5 + $0x28] sm:$0xff]
    %v167 = vld [vmem:[#allocation5 + $0x30] sm:$0xff]
    %v168 = vld [vmem:[#allocation5 + $0x38] sm:$0xff]
    %v169 = vld [vmem:[#allocation5 + $0x40] sm:$0xff]
    %v170 = vld [vmem:[#allocation5 + $0x48] sm:$0xff]
    %v171 = vld [vmem:[#allocation5 + $0x50] sm:$0xff]
    %v172 = vld [vmem:[#allocation5 + $0x58] sm:$0xff]
    %v173 = vld [vmem:[#allocation5 + $0x60] sm:$0xff]
    %v174 = vld [vmem:[#allocation5 + $0x68] sm:$0xff]
    %v175 = vld [vmem:[#allocation5 + $0x70] sm:$0xff]
    %v176 = vld [vmem:[#allocation5 + $0x78] sm:$0xff]
    %177 = vmatprep.subr.mxu0 0.0
    %178 = vmatpush1.msra.mxu0 %v161
    %179 = vmatprep.subr.mxu0 0.0
    %180 = vmatpush1.msra.mxu0 %v162
    %181 = vmatprep.subr.mxu0 0.0
    %182 = vmatpush1.msra.mxu0 %v163
    %183 = vmatprep.subr.mxu0 0.0
    %184 = vmatpush1.msra.mxu0 %v164
    %185 = vmatprep.subr.mxu0 0.0
    %186 = vmatpush1.msra.mxu0 %v165
    %187 = vmatprep.subr.mxu0 0.0
    %188 = vmatpush1.msra.mxu0 %v166
    %189 = vmatprep.subr.mxu0 0.0
    %190 = vmatpush1.msra.mxu0 %v167
    %191 = vmatprep.subr.mxu0 0.0
    %192 = vmatpush1.msra.mxu0 %v168
    %193 = vmatprep.subr.mxu0 0.0
    %194 = vmatpush1.msra.mxu0 %v169
    %195 = vmatprep.subr.mxu0 0.0
    %196 = vmatpush1.msra.mxu0 %v170
    %197 = vmatprep.subr.mxu0 0.0
    %198 = vmatpush1.msra.mxu0 %v171
    %199 = vmatprep.subr.mxu0 0.0
    %200 = vmatpush1.msra.mxu0 %v172
    %201 = vmatprep.subr.mxu0 0.0
    %202 = vmatpush1.msra.mxu0 %v173
    %203 = vmatprep.subr.mxu0 0.0
    %204 = vmatpush1.msra.mxu0 %v174
    %205 = vmatprep.subr.mxu0 0.0
    %206 = vmatpush1.msra.mxu0 %v175
    %207 = vmatprep.subr.mxu0 0.0
    %208 = vmatpush1.msra.mxu0 %v176
    %209 = vmatprep.subr.mxu0 0.0
    %210 = vmatpush1.msra.mxu0 0.0
    %211 = vmatprep.subr.mxu0 0.0
    %212 = vmatpush1.msra.mxu0 0.0
    %213 = vmatprep.subr.mxu0 0.0
    %214 = vmatpush1.msra.mxu0 0.0
    %215 = vmatprep.subr.mxu0 0.0
    %216 = vmatpush1.msra.mxu0 0.0
    %217 = vmatprep.subr.mxu0 0.0
    %218 = vmatpush1.msra.mxu0 0.0
    %219 = vmatprep.subr.mxu0 0.0
    %220 = vmatpush1.msra.mxu0 0.0
    %221 = vmatprep.subr.mxu0 0.0
    %222 = vmatpush1.msra.mxu0 0.0
    %223 = vmatprep.subr.mxu0 0.0
    %224 = vmatpush1.msra.mxu0 0.0
    %225 = vmatprep.subr.mxu0 0.0
    %226 = vmatpush1.msra.mxu0 0.0
    %227 = vmatprep.subr.mxu0 0.0
    %228 = vmatpush1.msra.mxu0 0.0
    %229 = vmatprep.subr.mxu0 0.0
    %230 = vmatpush1.msra.mxu0 0.0
    %231 = vmatprep.subr.mxu0 0.0
    %232 = vmatpush1.msra.mxu0 0.0
    %233 = vmatprep.subr.mxu0 0.0
    %234 = vmatpush1.msra.mxu0 0.0
    %235 = vmatprep.subr.mxu0 0.0
    %236 = vmatpush1.msra.mxu0 0.0
    %237 = vmatprep.subr.mxu0 0.0
    %238 = vmatpush1.msra.mxu0 0.0
    %239 = vmatprep.subr.mxu0 0.0
    %240 = vmatpush1.msra.mxu0 0.0
    %241 = vmatprep.mubr.f32.mxu0 0.0
    %242 = vmatmul.mubr.f32.gmra.mrb[0].mxu0 %v147
    %v243 = vpop.f32.mrb[0].mxu0
    %v244 = vadd.f32 0.0, %v243
    %v245 = vpop.f32.mrb[0].mxu0
    %246 = vdwg.mxu0
    %v247 = vadd.f32 %v160, %v244
    %248 = vst [vmem:[#allocation8] sm:$0xff] %v247
    // Predicated region
    $region34: #{sae_forward.1} parent=1 // pred_check
      _
    $region35: #{sae_forward.1} parent=1 // pred_check_branch
      %250 = sbr.rel (0) target = $region37
    $region36: #{sae_forward.1} parent=1 // pred_region
      %s252 = ssub.s32 128, 128
      %253 = vsyncadd [#allocation4], %s252
      %s255 = sshll.u32 [#allocation7], 4
      %s256 = int_to_ptr.vmem [resolvable:$true] %s255
      %258 = dma.vmem_to_hbm [thread:$0]  %s256, 128, %s5, [#allocation4]
    $region37: #{sae_forward.1} parent=1 // pred_fallthru
      _
    // Predicated region
    $region38: #{sae_forward.1} parent=1 // pred_check
      _
    $region39: #{sae_forward.1} parent=1 // pred_check_branch
      %260 = sbr.rel (0) target = $region41
    $region40: #{sae_forward.1} parent=1 // pred_region
      %s262 = ssub.s32 128, 128
      %263 = vsyncadd [#allocation9], %s262
      %s265 = sshll.u32 [#allocation8], 4
      %s266 = int_to_ptr.vmem [resolvable:$true] %s265
      %268 = dma.vmem_to_hbm [thread:$0]  %s266, 128, %s6, [#allocation9]
    $region41: #{sae_forward.1} parent=1 // pred_fallthru
      _
    // Predicated region
    $region42: #{sae_forward.1} parent=1 // pred_check
      _
    $region43: #{sae_forward.1} parent=1 // pred_check_branch
      %270 = sbr.rel (0) target = $region45
    $region44: #{sae_forward.1} parent=1 // pred_region
      %271 = dma.done [#allocation4], 128
    $region45: #{sae_forward.1} parent=1 // pred_fallthru
      _
    // Predicated region
    $region46: #{sae_forward.1} parent=1 // pred_check
      _
    $region47: #{sae_forward.1} parent=1 // pred_check_branch
      %273 = sbr.rel (0) target = $region49
    $region48: #{sae_forward.1} parent=1 // pred_region
      %274 = dma.done [#allocation9], 128
    $region49: #{sae_forward.1} parent=1 // pred_fallthru
      _
    %275 = vsyncpa [#allocation3], 1
    %276 = vsyncpa [#allocation6], 1
    %277 = vsyncpa [#allocation4], 1
    %278 = vsyncpa [#allocation9], 1

</llo_original>
